<compile_context>
chip_gen: v5e
topology: v5e:2x2
jax: 0.10.0
libtpu: 0.0.40
codegen_flags: <defaults>
</compile_context>

<pallas_src>
import jax
import jax.numpy as jnp
from jax.experimental import pallas as pl
from jax.experimental.pallas import tpu as pltpu


# ----------------------------------------------------------------------------- K1
def recurrence_kernel(e_ref, h0_ref, c0_ref, wih_ref, whh_ref, b_ref,
                      hall_ref, hT_ref, cT_ref, pre_sc):
    """Packed input projection (batched) + serial LSTM recurrence."""
    B, H = h0_ref.shape
    T = hall_ref.shape[0]

    # Phase 1: one (T*B, E) @ (E, 4H) matmul covers every timestep and every gate.
    pre_sc[...] = (jnp.dot(e_ref[...], wih_ref[...],
                           preferred_element_type=jnp.float32) + b_ref[...])

    # Phase 2: only the true recurrence stays on the serial chain.  One packed
    # (B, H) @ (H, 4H) dot per step; PyTorch nn.LSTMCell gate order is (i, f, g, o).
    whh = whh_ref[...]
    h = h0_ref[...]
    c = c0_ref[...]
    # TODO(synk): switch to lax.fori_loop(..., unroll=4) + dynamic pl.ds stores if T
    # grows beyond ~16 (a static unroll inflates vreg pressure / compile time).
    for t in range(T):
        gates = pre_sc[pl.ds(t * B, B), :] + jnp.dot(
            h.astype(jnp.bfloat16), whh, preferred_element_type=jnp.float32)
        sg = jax.nn.sigmoid(gates)          # full-vreg VPU/EUP math in f32 ...
        th = jnp.tanh(gates)
        i_g = sg[:, 0 * H:1 * H]            # ... then cheap static lane slices
        f_g = sg[:, 1 * H:2 * H]
        g_g = th[:, 2 * H:3 * H]
        o_g = sg[:, 3 * H:4 * H]
        c = f_g * c + i_g * g_g
        h = o_g * jnp.tanh(c)
        hall_ref[t] = h.astype(hall_ref.dtype)

    hT_ref[...] = h
    cT_ref[...] = c


# ----------------------------------------------------------------------------- K2
def attention_kernel(h_ref, ctx_ref, wa_ref, a_ref):
    """Dot attention + Wa projection for all timesteps, batched on the MXU."""
    B, T, H = h_ref.shape
    h = h_ref[...]                                             # (B, T, H) bf16
    ctx = ctx_ref[...]                                         # (B, S, H) bf16

    scores = jnp.einsum('bth,bsh->bts', h, ctx,
                        preferred_element_type=jnp.float32)    # (B, T, S) f32
    scores = scores - jnp.max(scores, axis=-1, keepdims=True)
    p = jnp.exp(scores)
    attn = p / jnp.sum(p, axis=-1, keepdims=True)              # exact softmax
    wctx = jnp.einsum('bts,bsh->bth', attn.astype(jnp.bfloat16), ctx,
                      preferred_element_type=jnp.float32)      # (B, T, H) f32

    # linear(cat(h, wctx)) == h @ Wa[:H] + wctx @ Wa[H:]  (avoids in-kernel concat)
    h2 = h.reshape(B * T, H)
    w2 = wctx.reshape(B * T, H).astype(jnp.bfloat16)
    a = jnp.tanh(jnp.dot(h2, wa_ref[0], preferred_element_type=jnp.float32)
                 + jnp.dot(w2, wa_ref[1], preferred_element_type=jnp.float32))
    a_ref[...] = a.astype(a_ref.dtype)


# ----------------------------------------------------------------------------- K3
def projection_kernel(a_ref, wl_ref, bl_ref, logits_ref, lse_ref, m_sc, l_sc):
    """One (rows, V)-tile of the output projection + online logsumexp over V."""
    j = pl.program_id(1)

    @pl.when(j == 0)
    def _():
        m_sc[...] = jnp.full_like(m_sc, -jnp.inf)
        l_sc[...] = jnp.zeros_like(l_sc)

    logits = (jnp.dot(a_ref[...], wl_ref[...],
                      preferred_element_type=jnp.float32) + bl_ref[...])
    logits_ref[...] = logits

    m_new = jnp.maximum(m_sc[...], jnp.max(logits, axis=-1, keepdims=True))
    l_sc[...] = (l_sc[...] * jnp.exp(m_sc[...] - m_new)
                 + jnp.sum(jnp.exp(logits - m_new), axis=-1, keepdims=True))
    m_sc[...] = m_new

    @pl.when(j == pl.num_programs(1) - 1)
    def _():
        lse_ref[...] = m_sc[...] + jnp.log(l_sc[...])


# ----------------------------------------------------------------------------- K4
def normalize_kernel(logits_ref, lse_ref, logp_ref):
    logp_ref[...] = logits_ref[...] - lse_ref[...]


# ------------------------------------------------------------------------ wrapper
def decoder_forward(x_seq, h0, c0, context, params, *, tv=128, tr=32,
                    vmem_limit_bytes=None):
    """Full Decoder forward.  At realistic sizes (V >= 32K, H >= 512) raise `tv`
    toward 512-2048 and set `vmem_limit_bytes` per generation (e.g. ~48 MiB on
    v7x's 64 MiB VMEM, up to ~96 MiB on v5e/v6e's 128 MiB)."""
    emb = params["embedding"]
    T, B = x_seq.shape
    E = emb.shape[1]
    H = h0.shape[1]
    S = context.shape[1]
    V = params["wl"].shape[1]
    TB = T * B
    tv = min(tv, V)
    tr = min(tr, TB)
    assert V % tv == 0 and tv % 128 == 0 and TB % tr == 0 and tr % 8 == 0

    # Embedding lookup (padding_idx row is zero in the table) — gather glue in JAX.
    # TODO(synk): fold into K1 via scalar prefetch (ids in SMEM) + DMA row gather.
    e_flat = jnp.take(emb, x_seq.reshape(-1), axis=0).astype(jnp.bfloat16)  # (T*B, E)

    # One-time weight prep (XLA, outside the kernels): keep W_ih / W_hh packed as
    # (·, 4H) and cast all matmul operands to bf16 (f32 accumulation in-kernel).
    wih = params["wih"].astype(jnp.bfloat16)                    # (E, 4H)
    whh = params["whh"].astype(jnp.bfloat16)                    # (H, 4H)
    b = params["b"].astype(jnp.float32)                         # (1, 4H)
    wa = params["wa"].reshape(2, H, H).astype(jnp.bfloat16)     # (2, H, H)
    wl = params["wl"].astype(jnp.bfloat16)                      # (H, V)
    bl = params["bl"].astype(jnp.float32)                       # (1, V)

    # ---- K1: packed input projection + serial LSTM recurrence ----
    h_all, h_T, c_T = pl.pallas_call(
        recurrence_kernel,
        out_shape=(jax.ShapeDtypeStruct((T, B, H), jnp.bfloat16),
                   jax.ShapeDtypeStruct((B, H), jnp.float32),
                   jax.ShapeDtypeStruct((B, H), jnp.float32)),
        grid_spec=pltpu.PrefetchScalarGridSpec(
            num_scalar_prefetch=0,
            grid=(1,),
            in_specs=[pl.BlockSpec((TB, E), lambda i: (0, 0)),
                      pl.BlockSpec((B, H), lambda i: (0, 0)),
                      pl.BlockSpec((B, H), lambda i: (0, 0)),
                      pl.BlockSpec((E, 4 * H), lambda i: (0, 0)),
                      pl.BlockSpec((H, 4 * H), lambda i: (0, 0)),
                      pl.BlockSpec((1, 4 * H), lambda i: (0, 0))],
            out_specs=[pl.BlockSpec((T, B, H), lambda i: (0, 0, 0)),
                       pl.BlockSpec((B, H), lambda i: (0, 0)),
                       pl.BlockSpec((B, H), lambda i: (0, 0))],
            scratch_shapes=[pltpu.VMEM((TB, 4 * H), jnp.float32)]),
        compiler_params=pltpu.CompilerParams(
            dimension_semantics=("arbitrary",),
            vmem_limit_bytes=vmem_limit_bytes),
    )(e_flat, h0, c0, wih, whh, b)

    # Layout glue (XLA, tiny): batch-first h for the batched attention matmuls.
    h_bth = jnp.transpose(h_all, (1, 0, 2))                     # (B, T, H) bf16
    ctx_bf = context.astype(jnp.bfloat16)

    # ---- K2: batched dot attention + Wa projection ----
    a = pl.pallas_call(
        attention_kernel,
        out_shape=jax.ShapeDtypeStruct((TB, H), jnp.bfloat16),
        grid_spec=pltpu.PrefetchScalarGridSpec(
            num_scalar_prefetch=0,
            grid=(1,),
            in_specs=[pl.BlockSpec((B, T, H), lambda i: (0, 0, 0)),
                      pl.BlockSpec((B, S, H), lambda i: (0, 0, 0)),
                      pl.BlockSpec((2, H, H), lambda i: (0, 0, 0))],
            out_specs=pl.BlockSpec((TB, H), lambda i: (0, 0))),
        compiler_params=pltpu.CompilerParams(
            dimension_semantics=("arbitrary",),
            vmem_limit_bytes=vmem_limit_bytes),
    )(h_bth, ctx_bf, wa)

    # ---- K3: V-tiled output projection + online logsumexp ----
    n_rows, n_v = TB // tr, V // tv
    cost = pl.CostEstimate(
        flops=2 * TB * H * V,
        transcendentals=TB * V,
        bytes_accessed=H * V * 2 + TB * V * 4 + TB * H * 2 + V * 4 + TB * 4)
    logits, lse = pl.pallas_call(
        projection_kernel,
        out_shape=(jax.ShapeDtypeStruct((TB, V), jnp.float32),
                   jax.ShapeDtypeStruct((TB, 1), jnp.float32)),
        grid_spec=pltpu.PrefetchScalarGridSpec(
            num_scalar_prefetch=0,
            grid=(n_rows, n_v),
            in_specs=[pl.BlockSpec((tr, H), lambda r, j: (r, 0)),
                      pl.BlockSpec((H, tv), lambda r, j: (0, j)),
                      pl.BlockSpec((1, tv), lambda r, j: (0, j))],
            out_specs=[pl.BlockSpec((tr, tv), lambda r, j: (r, j)),
                       pl.BlockSpec((tr, 1), lambda r, j: (r, 0))],
            scratch_shapes=[pltpu.VMEM((tr, 1), jnp.float32),
                            pltpu.VMEM((tr, 1), jnp.float32)]),
        compiler_params=pltpu.CompilerParams(
            dimension_semantics=("parallel", "arbitrary"),
            vmem_limit_bytes=vmem_limit_bytes),
        cost_estimate=cost,
    )(a, wl, bl)

    # ---- K4: logp = logits - lse (lane-dense tiles, fully parallel) ----
    logp_flat = pl.pallas_call(
        normalize_kernel,
        out_shape=jax.ShapeDtypeStruct((TB, V), jnp.float32),
        grid_spec=pltpu.PrefetchScalarGridSpec(
            num_scalar_prefetch=0,
            grid=(n_rows, n_v),
            in_specs=[pl.BlockSpec((tr, tv), lambda r, j: (r, j)),
                      pl.BlockSpec((tr, 1), lambda r, j: (r, 0))],
            out_specs=pl.BlockSpec((tr, tv), lambda r, j: (r, j))),
        compiler_params=pltpu.CompilerParams(
            dimension_semantics=("parallel", "parallel"),
            vmem_limit_bytes=vmem_limit_bytes),
    )(logits, lse)

    # Rows are b-major (row = b*T + t); restore the PyTorch (T, B, V) ordering.
    logp = jnp.transpose(logp_flat.reshape(B, T, V), (1, 0, 2))
    return logp, h_T, c_T


# ---------------------------------------------------------------------- reference
def decoder_ref(x_seq, h0, c0, context, params):
    """Pure-JAX f32 reference mirroring the PyTorch forward."""
    H = h0.shape[1]
    e_seq = jnp.take(params["embedding"], x_seq, axis=0)

    def step(carry, e):
        h, c = carry
        gates = e @ params["wih"] + h @ params["whh"] + params["b"][0]
        i = jax.nn.sigmoid(gates[:, :H])
        f = jax.nn.sigmoid(gates[:, H:2 * H])
        g = jnp.tanh(gates[:, 2 * H:3 * H])
        o = jax.nn.sigmoid(gates[:, 3 * H:])
        c = f * c + i * g
        h = o * jnp.tanh(c)
        scores = jnp.einsum('bsh,bh->bs', context, h)
        attn = jax.nn.softmax(scores, axis=1)
        wctx = jnp.einsum('bs,bsh->bh', attn, context)
        a = jnp.tanh(jnp.concatenate([h, wctx], axis=1) @ params["wa"])
        logits = a @ params["wl"] + params["bl"][0]
        return (h, c), jax.nn.log_softmax(logits, axis=-1)

    (h, c), out = jax.lax.scan(step, (h0, c0), e_seq)
    return out, h, c


if __name__ == "__main__":
    # Small shapes consistent with the module; V=512 / tv=128 / tr=32 exercises the
    # V-tiled grid (4 vocab tiles) and the row-parallel axis (2 row tiles).
    T, B = 8, 8                    # seq len, batch
    V, E, H, S = 512, 32, 32, 16   # vocab, d_embed, d_hidden, context src len

    key = jax.random.PRNGKey(0)
    ks = jax.random.split(key, 10)

    emb = 0.1 * jax.random.normal(ks[0], (V, E), jnp.float32)
    emb = emb.at[1].set(0.0)       # padding_idx=1 row is zero
    params = {
        "embedding": emb,
        "wih": 0.1 * jax.random.normal(ks[1], (E, 4 * H), jnp.float32),
        "whh": 0.1 * jax.random.normal(ks[2], (H, 4 * H), jnp.float32),
        "b":   0.1 * jax.random.normal(ks[3], (1, 4 * H), jnp.float32),
        "wa":  0.1 * jax.random.normal(ks[4], (2 * H, H), jnp.float32),
        "wl":  0.1 * jax.random.normal(ks[5], (H, V), jnp.float32),
        "bl":  0.1 * jax.random.normal(ks[6], (1, V), jnp.float32),
    }

    x_seq = jax.random.randint(ks[7], (T, B), 0, V, jnp.int32)
    h0 = 0.1 * jax.random.normal(ks[8], (B, H), jnp.float32)
    c0 = 0.1 * jax.random.normal(ks[9], (B, H), jnp.float32)
    context = 0.1 * jax.random.normal(jax.random.PRNGKey(42), (B, S, H), jnp.float32)

    logp, h_out, c_out = jax.block_until_ready(
        decoder_forward(x_seq, h0, c0, context, params))

    # Correctness vs the pure-f32 reference (bf16 matmul operands with f32
    # accumulation bound the error).
    logp_r, h_r, c_r = decoder_ref(x_seq, h0, c0, context, params)
    assert logp.shape == (T, B, V) and h_out.shape == (B, H) and c_out.shape == (B, H)
    assert jnp.allclose(logp, logp_r, atol=3e-2, rtol=1e-3), \
        float(jnp.max(jnp.abs(logp - logp_r)))
    assert jnp.allclose(h_out, h_r, atol=2e-2, rtol=1e-3), \
        float(jnp.max(jnp.abs(h_out - h_r)))
    assert jnp.allclose(c_out, c_r, atol=2e-2, rtol=1e-3), \
        float(jnp.max(jnp.abs(c_out - c_r)))

    print("KERNEL_OK")
</pallas_src>

<mosaic_0001>
module attributes {stable_mosaic.version = 11 : i64} {
  func.func @recurrence_kernel(%arg0: i32, %arg1: memref<64x32xbf16, #tpu.memory_space<vmem>>, %arg2: memref<8x32xf32, #tpu.memory_space<vmem>>, %arg3: memref<8x32xf32, #tpu.memory_space<vmem>>, %arg4: memref<32x128xbf16, #tpu.memory_space<vmem>>, %arg5: memref<32x128xbf16, #tpu.memory_space<vmem>>, %arg6: memref<1x128xf32, #tpu.memory_space<vmem>>, %arg7: memref<8x8x32xbf16, #tpu.memory_space<vmem>>, %arg8: memref<8x32xf32, #tpu.memory_space<vmem>>, %arg9: memref<8x32xf32, #tpu.memory_space<vmem>>, %arg10: memref<64x128xf32, #tpu.memory_space<vmem>>) attributes {dimension_semantics = [#tpu.dimension_semantics<arbitrary>], iteration_bounds = array<i64: 1>, scalar_prefetch = 0 : i64, scratch_operands = 1 : i64, tpu.core_type = #tpu.core_type<tc>, window_params = [{pipeline_mode = #tpu.pipeline_mode<synchronous>, transform_indices = @transform_0, window_bounds = array<i64: 64, 32>}, {pipeline_mode = #tpu.pipeline_mode<synchronous>, transform_indices = @transform_1, window_bounds = array<i64: 8, 32>}, {pipeline_mode = #tpu.pipeline_mode<synchronous>, transform_indices = @transform_2, window_bounds = array<i64: 8, 32>}, {pipeline_mode = #tpu.pipeline_mode<synchronous>, transform_indices = @transform_3, window_bounds = array<i64: 32, 128>}, {pipeline_mode = #tpu.pipeline_mode<synchronous>, transform_indices = @transform_4, window_bounds = array<i64: 32, 128>}, {pipeline_mode = #tpu.pipeline_mode<synchronous>, transform_indices = @transform_5, window_bounds = array<i64: 1, 128>}, {pipeline_mode = #tpu.pipeline_mode<synchronous>, transform_indices = @transform_6, window_bounds = array<i64: 8, 8, 32>}, {pipeline_mode = #tpu.pipeline_mode<synchronous>, transform_indices = @transform_7, window_bounds = array<i64: 8, 32>}, {pipeline_mode = #tpu.pipeline_mode<synchronous>, transform_indices = @transform_8, window_bounds = array<i64: 8, 32>}]} {
    %c0 = arith.constant 0 : index
    %c0_0 = arith.constant 0 : index
    %0 = vector.load %arg1[%c0, %c0_0] : memref<64x32xbf16, #tpu.memory_space<vmem>>, vector<64x32xbf16>
    %c0_1 = arith.constant 0 : index
    %c0_2 = arith.constant 0 : index
    %1 = vector.load %arg4[%c0_1, %c0_2] : memref<32x128xbf16, #tpu.memory_space<vmem>>, vector<32x128xbf16>
    %cst = arith.constant dense<0.000000e+00> : vector<64x128xf32>
    %2 = tpu.matmul %0, %1, %cst {dimension_numbers = #tpu.dot_dimension_numbers<[1], [0], [0], [1], [0, 0, 1, 1], [], []>} : vector<64x32xbf16>, vector<32x128xbf16>, vector<64x128xf32> -> vector<64x128xf32>
    %c0_3 = arith.constant 0 : index
    %c0_4 = arith.constant 0 : index
    %3 = vector.load %arg6[%c0_3, %c0_4] : memref<1x128xf32, #tpu.memory_space<vmem>>, vector<1x128xf32>
    %4 = vector.broadcast %3 : vector<1x128xf32> to vector<64x128xf32>
    %5 = arith.addf %2, %4 : vector<64x128xf32>
    %c0_5 = arith.constant 0 : index
    %c0_6 = arith.constant 0 : index
    %6 = vector.load %arg10[%c0_5, %c0_6] : memref<64x128xf32, #tpu.memory_space<vmem>>, vector<64x128xf32>
    tpu.vector_store %arg10[%c0_5, %c0_6], %5 {strides = array<i32>} : memref<64x128xf32, #tpu.memory_space<vmem>>, vector<64x128xf32>,
    %c0_7 = arith.constant 0 : index
    %c0_8 = arith.constant 0 : index
    %7 = vector.load %arg5[%c0_7, %c0_8] : memref<32x128xbf16, #tpu.memory_space<vmem>>, vector<32x128xbf16>
    %c0_9 = arith.constant 0 : index
    %c0_10 = arith.constant 0 : index
    %8 = vector.load %arg2[%c0_9, %c0_10] : memref<8x32xf32, #tpu.memory_space<vmem>>, vector<8x32xf32>
    %c0_11 = arith.constant 0 : index
    %c0_12 = arith.constant 0 : index
    %9 = vector.load %arg3[%c0_11, %c0_12] : memref<8x32xf32, #tpu.memory_space<vmem>>, vector<8x32xf32>
    %c0_13 = arith.constant 0 : index
    %c0_14 = arith.constant 0 : index
    %10 = vector.load %arg10[%c0_13, %c0_14] : memref<64x128xf32, #tpu.memory_space<vmem>>, vector<8x128xf32>
    %11 = arith.truncf %8 : vector<8x32xf32> to vector<8x32xbf16>
    %cst_15 = arith.constant dense<0.000000e+00> : vector<8x128xf32>
    %12 = tpu.matmul %11, %7, %cst_15 {dimension_numbers = #tpu.dot_dimension_numbers<[1], [0], [0], [1], [0, 0, 1, 1], [], []>} : vector<8x32xbf16>, vector<32x128xbf16>, vector<8x128xf32> -> vector<8x128xf32>
    %13 = arith.addf %10, %12 : vector<8x128xf32>
    %14 = arith.negf %13 : vector<8x128xf32>
    %15 = math.exp %14 : vector<8x128xf32>
    %cst_16 = arith.constant 1.000000e+00 : f32
    %16 = vector.broadcast %cst_16 : f32 to vector<8x128xf32>
    %17 = arith.addf %16, %15 : vector<8x128xf32>
    %18 = arith.divf %16, %17 : vector<8x128xf32>
    %19 = math.tanh %13 : vector<8x128xf32>
    %20 = vector.extract_strided_slice %18 {offsets = [0, 0], sizes = [8, 32], strides = [1, 1]} : vector<8x128xf32> to vector<8x32xf32>
    %21 = vector.extract_strided_slice %18 {offsets = [0, 32], sizes = [8, 32], strides = [1, 1]} : vector<8x128xf32> to vector<8x32xf32>
    %22 = vector.extract_strided_slice %19 {offsets = [0, 64], sizes = [8, 32], strides = [1, 1]} : vector<8x128xf32> to vector<8x32xf32>
    %23 = vector.extract_strided_slice %18 {offsets = [0, 96], sizes = [8, 32], strides = [1, 1]} : vector<8x128xf32> to vector<8x32xf32>
    %24 = arith.mulf %21, %9 : vector<8x32xf32>
    %25 = arith.mulf %20, %22 : vector<8x32xf32>
    %26 = arith.addf %24, %25 : vector<8x32xf32>
    %27 = math.tanh %26 : vector<8x32xf32>
    %28 = arith.mulf %23, %27 : vector<8x32xf32>
    %29 = arith.truncf %28 : vector<8x32xf32> to vector<8x32xbf16>
    %c0_17 = arith.constant 0 : index
    %c0_18 = arith.constant 0 : index
    %c0_19 = arith.constant 0 : index
    %30 = vector.load %arg7[%c0_17, %c0_18, %c0_19] : memref<8x8x32xbf16, #tpu.memory_space<vmem>>, vector<1x8x32xbf16>
    %31 = vector.shape_cast %30 : vector<1x8x32xbf16> to vector<8x32xbf16>
    %32 = vector.shape_cast %29 : vector<8x32xbf16> to vector<1x8x32xbf16>
    tpu.vector_store %arg7[%c0_17, %c0_18, %c0_19], %32 {strides = array<i32>} : memref<8x8x32xbf16, #tpu.memory_space<vmem>>, vector<1x8x32xbf16>,
    %c8 = arith.constant 8 : index
    %c0_20 = arith.constant 0 : index
    %33 = vector.load %arg10[%c8, %c0_20] : memref<64x128xf32, #tpu.memory_space<vmem>>, vector<8x128xf32>
    %34 = arith.truncf %28 : vector<8x32xf32> to vector<8x32xbf16>
    %cst_21 = arith.constant dense<0.000000e+00> : vector<8x128xf32>
    %35 = tpu.matmul %34, %7, %cst_21 {dimension_numbers = #tpu.dot_dimension_numbers<[1], [0], [0], [1], [0, 0, 1, 1], [], []>} : vector<8x32xbf16>, vector<32x128xbf16>, vector<8x128xf32> -> vector<8x128xf32>
    %36 = arith.addf %33, %35 : vector<8x128xf32>
    %37 = arith.negf %36 : vector<8x128xf32>
    %38 = math.exp %37 : vector<8x128xf32>
    %cst_22 = arith.constant 1.000000e+00 : f32
    %39 = vector.broadcast %cst_22 : f32 to vector<8x128xf32>
    %40 = arith.addf %39, %38 : vector<8x128xf32>
    %41 = arith.divf %39, %40 : vector<8x128xf32>
    %42 = math.tanh %36 : vector<8x128xf32>
    %43 = vector.extract_strided_slice %41 {offsets = [0, 0], sizes = [8, 32], strides = [1, 1]} : vector<8x128xf32> to vector<8x32xf32>
    %44 = vector.extract_strided_slice %41 {offsets = [0, 32], sizes = [8, 32], strides = [1, 1]} : vector<8x128xf32> to vector<8x32xf32>
    %45 = vector.extract_strided_slice %42 {offsets = [0, 64], sizes = [8, 32], strides = [1, 1]} : vector<8x128xf32> to vector<8x32xf32>
    %46 = vector.extract_strided_slice %41 {offsets = [0, 96], sizes = [8, 32], strides = [1, 1]} : vector<8x128xf32> to vector<8x32xf32>
    %47 = arith.mulf %44, %26 : vector<8x32xf32>
    %48 = arith.mulf %43, %45 : vector<8x32xf32>
    %49 = arith.addf %47, %48 : vector<8x32xf32>
    %50 = math.tanh %49 : vector<8x32xf32>
    %51 = arith.mulf %46, %50 : vector<8x32xf32>
    %52 = arith.truncf %51 : vector<8x32xf32> to vector<8x32xbf16>
    %c1 = arith.constant 1 : index
    %c0_23 = arith.constant 0 : index
    %c0_24 = arith.constant 0 : index
    %53 = vector.load %arg7[%c1, %c0_23, %c0_24] : memref<8x8x32xbf16, #tpu.memory_space<vmem>>, vector<1x8x32xbf16>
    %54 = vector.shape_cast %53 : vector<1x8x32xbf16> to vector<8x32xbf16>
    %55 = vector.shape_cast %52 : vector<8x32xbf16> to vector<1x8x32xbf16>
    tpu.vector_store %arg7[%c1, %c0_23, %c0_24], %55 {strides = array<i32>} : memref<8x8x32xbf16, #tpu.memory_space<vmem>>, vector<1x8x32xbf16>,
    %c16 = arith.constant 16 : index
    %c0_25 = arith.constant 0 : index
    %56 = vector.load %arg10[%c16, %c0_25] : memref<64x128xf32, #tpu.memory_space<vmem>>, vector<8x128xf32>
    %57 = arith.truncf %51 : vector<8x32xf32> to vector<8x32xbf16>
    %cst_26 = arith.constant dense<0.000000e+00> : vector<8x128xf32>
    %58 = tpu.matmul %57, %7, %cst_26 {dimension_numbers = #tpu.dot_dimension_numbers<[1], [0], [0], [1], [0, 0, 1, 1], [], []>} : vector<8x32xbf16>, vector<32x128xbf16>, vector<8x128xf32> -> vector<8x128xf32>
    %59 = arith.addf %56, %58 : vector<8x128xf32>
    %60 = arith.negf %59 : vector<8x128xf32>
    %61 = math.exp %60 : vector<8x128xf32>
    %cst_27 = arith.constant 1.000000e+00 : f32
    %62 = vector.broadcast %cst_27 : f32 to vector<8x128xf32>
    %63 = arith.addf %62, %61 : vector<8x128xf32>
    %64 = arith.divf %62, %63 : vector<8x128xf32>
    %65 = math.tanh %59 : vector<8x128xf32>
    %66 = vector.extract_strided_slice %64 {offsets = [0, 0], sizes = [8, 32], strides = [1, 1]} : vector<8x128xf32> to vector<8x32xf32>
    %67 = vector.extract_strided_slice %64 {offsets = [0, 32], sizes = [8, 32], strides = [1, 1]} : vector<8x128xf32> to vector<8x32xf32>
    %68 = vector.extract_strided_slice %65 {offsets = [0, 64], sizes = [8, 32], strides = [1, 1]} : vector<8x128xf32> to vector<8x32xf32>
    %69 = vector.extract_strided_slice %64 {offsets = [0, 96], sizes = [8, 32], strides = [1, 1]} : vector<8x128xf32> to vector<8x32xf32>
    %70 = arith.mulf %67, %49 : vector<8x32xf32>
    %71 = arith.mulf %66, %68 : vector<8x32xf32>
    %72 = arith.addf %70, %71 : vector<8x32xf32>
    %73 = math.tanh %72 : vector<8x32xf32>
    %74 = arith.mulf %69, %73 : vector<8x32xf32>
    %75 = arith.truncf %74 : vector<8x32xf32> to vector<8x32xbf16>
    %c2 = arith.constant 2 : index
    %c0_28 = arith.constant 0 : index
    %c0_29 = arith.constant 0 : index
    %76 = vector.load %arg7[%c2, %c0_28, %c0_29] : memref<8x8x32xbf16, #tpu.memory_space<vmem>>, vector<1x8x32xbf16>
    %77 = vector.shape_cast %76 : vector<1x8x32xbf16> to vector<8x32xbf16>
    %78 = vector.shape_cast %75 : vector<8x32xbf16> to vector<1x8x32xbf16>
    tpu.vector_store %arg7[%c2, %c0_28, %c0_29], %78 {strides = array<i32>} : memref<8x8x32xbf16, #tpu.memory_space<vmem>>, vector<1x8x32xbf16>,
    %c24 = arith.constant 24 : index
    %c0_30 = arith.constant 0 : index
    %79 = vector.load %arg10[%c24, %c0_30] : memref<64x128xf32, #tpu.memory_space<vmem>>, vector<8x128xf32>
    %80 = arith.truncf %74 : vector<8x32xf32> to vector<8x32xbf16>
    %cst_31 = arith.constant dense<0.000000e+00> : vector<8x128xf32>
    %81 = tpu.matmul %80, %7, %cst_31 {dimension_numbers = #tpu.dot_dimension_numbers<[1], [0], [0], [1], [0, 0, 1, 1], [], []>} : vector<8x32xbf16>, vector<32x128xbf16>, vector<8x128xf32> -> vector<8x128xf32>
    %82 = arith.addf %79, %81 : vector<8x128xf32>
    %83 = arith.negf %82 : vector<8x128xf32>
    %84 = math.exp %83 : vector<8x128xf32>
    %cst_32 = arith.constant 1.000000e+00 : f32
    %85 = vector.broadcast %cst_32 : f32 to vector<8x128xf32>
    %86 = arith.addf %85, %84 : vector<8x128xf32>
    %87 = arith.divf %85, %86 : vector<8x128xf32>
    %88 = math.tanh %82 : vector<8x128xf32>
    %89 = vector.extract_strided_slice %87 {offsets = [0, 0], sizes = [8, 32], strides = [1, 1]} : vector<8x128xf32> to vector<8x32xf32>
    %90 = vector.extract_strided_slice %87 {offsets = [0, 32], sizes = [8, 32], strides = [1, 1]} : vector<8x128xf32> to vector<8x32xf32>
    %91 = vector.extract_strided_slice %88 {offsets = [0, 64], sizes = [8, 32], strides = [1, 1]} : vector<8x128xf32> to vector<8x32xf32>
    %92 = vector.extract_strided_slice %87 {offsets = [0, 96], sizes = [8, 32], strides = [1, 1]} : vector<8x128xf32> to vector<8x32xf32>
    %93 = arith.mulf %90, %72 : vector<8x32xf32>
    %94 = arith.mulf %89, %91 : vector<8x32xf32>
    %95 = arith.addf %93, %94 : vector<8x32xf32>
    %96 = math.tanh %95 : vector<8x32xf32>
    %97 = arith.mulf %92, %96 : vector<8x32xf32>
    %98 = arith.truncf %97 : vector<8x32xf32> to vector<8x32xbf16>
    %c3 = arith.constant 3 : index
    %c0_33 = arith.constant 0 : index
    %c0_34 = arith.constant 0 : index
    %99 = vector.load %arg7[%c3, %c0_33, %c0_34] : memref<8x8x32xbf16, #tpu.memory_space<vmem>>, vector<1x8x32xbf16>
    %100 = vector.shape_cast %99 : vector<1x8x32xbf16> to vector<8x32xbf16>
    %101 = vector.shape_cast %98 : vector<8x32xbf16> to vector<1x8x32xbf16>
    tpu.vector_store %arg7[%c3, %c0_33, %c0_34], %101 {strides = array<i32>} : memref<8x8x32xbf16, #tpu.memory_space<vmem>>, vector<1x8x32xbf16>,
    %c32 = arith.constant 32 : index
    %c0_35 = arith.constant 0 : index
    %102 = vector.load %arg10[%c32, %c0_35] : memref<64x128xf32, #tpu.memory_space<vmem>>, vector<8x128xf32>
    %103 = arith.truncf %97 : vector<8x32xf32> to vector<8x32xbf16>
    %cst_36 = arith.constant dense<0.000000e+00> : vector<8x128xf32>
    %104 = tpu.matmul %103, %7, %cst_36 {dimension_numbers = #tpu.dot_dimension_numbers<[1], [0], [0], [1], [0, 0, 1, 1], [], []>} : vector<8x32xbf16>, vector<32x128xbf16>, vector<8x128xf32> -> vector<8x128xf32>
    %105 = arith.addf %102, %104 : vector<8x128xf32>
    %106 = arith.negf %105 : vector<8x128xf32>
    %107 = math.exp %106 : vector<8x128xf32>
    %cst_37 = arith.constant 1.000000e+00 : f32
    %108 = vector.broadcast %cst_37 : f32 to vector<8x128xf32>
    %109 = arith.addf %108, %107 : vector<8x128xf32>
    %110 = arith.divf %108, %109 : vector<8x128xf32>
    %111 = math.tanh %105 : vector<8x128xf32>
    %112 = vector.extract_strided_slice %110 {offsets = [0, 0], sizes = [8, 32], strides = [1, 1]} : vector<8x128xf32> to vector<8x32xf32>
    %113 = vector.extract_strided_slice %110 {offsets = [0, 32], sizes = [8, 32], strides = [1, 1]} : vector<8x128xf32> to vector<8x32xf32>
    %114 = vector.extract_strided_slice %111 {offsets = [0, 64], sizes = [8, 32], strides = [1, 1]} : vector<8x128xf32> to vector<8x32xf32>
    %115 = vector.extract_strided_slice %110 {offsets = [0, 96], sizes = [8, 32], strides = [1, 1]} : vector<8x128xf32> to vector<8x32xf32>
    %116 = arith.mulf %113, %95 : vector<8x32xf32>
    %117 = arith.mulf %112, %114 : vector<8x32xf32>
    %118 = arith.addf %116, %117 : vector<8x32xf32>
    %119 = math.tanh %118 : vector<8x32xf32>
    %120 = arith.mulf %115, %119 : vector<8x32xf32>
    %121 = arith.truncf %120 : vector<8x32xf32> to vector<8x32xbf16>
    %c4 = arith.constant 4 : index
    %c0_38 = arith.constant 0 : index
    %c0_39 = arith.constant 0 : index
    %122 = vector.load %arg7[%c4, %c0_38, %c0_39] : memref<8x8x32xbf16, #tpu.memory_space<vmem>>, vector<1x8x32xbf16>
    %123 = vector.shape_cast %122 : vector<1x8x32xbf16> to vector<8x32xbf16>
    %124 = vector.shape_cast %121 : vector<8x32xbf16> to vector<1x8x32xbf16>
    tpu.vector_store %arg7[%c4, %c0_38, %c0_39], %124 {strides = array<i32>} : memref<8x8x32xbf16, #tpu.memory_space<vmem>>, vector<1x8x32xbf16>,
    %c40 = arith.constant 40 : index
    %c0_40 = arith.constant 0 : index
    %125 = vector.load %arg10[%c40, %c0_40] : memref<64x128xf32, #tpu.memory_space<vmem>>, vector<8x128xf32>
    %126 = arith.truncf %120 : vector<8x32xf32> to vector<8x32xbf16>
    %cst_41 = arith.constant dense<0.000000e+00> : vector<8x128xf32>
    %127 = tpu.matmul %126, %7, %cst_41 {dimension_numbers = #tpu.dot_dimension_numbers<[1], [0], [0], [1], [0, 0, 1, 1], [], []>} : vector<8x32xbf16>, vector<32x128xbf16>, vector<8x128xf32> -> vector<8x128xf32>
    %128 = arith.addf %125, %127 : vector<8x128xf32>
    %129 = arith.negf %128 : vector<8x128xf32>
    %130 = math.exp %129 : vector<8x128xf32>
    %cst_42 = arith.constant 1.000000e+00 : f32
    %131 = vector.broadcast %cst_42 : f32 to vector<8x128xf32>
    %132 = arith.addf %131, %130 : vector<8x128xf32>
    %133 = arith.divf %131, %132 : vector<8x128xf32>
    %134 = math.tanh %128 : vector<8x128xf32>
    %135 = vector.extract_strided_slice %133 {offsets = [0, 0], sizes = [8, 32], strides = [1, 1]} : vector<8x128xf32> to vector<8x32xf32>
    %136 = vector.extract_strided_slice %133 {offsets = [0, 32], sizes = [8, 32], strides = [1, 1]} : vector<8x128xf32> to vector<8x32xf32>
    %137 = vector.extract_strided_slice %134 {offsets = [0, 64], sizes = [8, 32], strides = [1, 1]} : vector<8x128xf32> to vector<8x32xf32>
    %138 = vector.extract_strided_slice %133 {offsets = [0, 96], sizes = [8, 32], strides = [1, 1]} : vector<8x128xf32> to vector<8x32xf32>
    %139 = arith.mulf %136, %118 : vector<8x32xf32>
    %140 = arith.mulf %135, %137 : vector<8x32xf32>
    %141 = arith.addf %139, %140 : vector<8x32xf32>
    %142 = math.tanh %141 : vector<8x32xf32>
    %143 = arith.mulf %138, %142 : vector<8x32xf32>
    %144 = arith.truncf %143 : vector<8x32xf32> to vector<8x32xbf16>
    %c5 = arith.constant 5 : index
    %c0_43 = arith.constant 0 : index
    %c0_44 = arith.constant 0 : index
    %145 = vector.load %arg7[%c5, %c0_43, %c0_44] : memref<8x8x32xbf16, #tpu.memory_space<vmem>>, vector<1x8x32xbf16>
    %146 = vector.shape_cast %145 : vector<1x8x32xbf16> to vector<8x32xbf16>
    %147 = vector.shape_cast %144 : vector<8x32xbf16> to vector<1x8x32xbf16>
    tpu.vector_store %arg7[%c5, %c0_43, %c0_44], %147 {strides = array<i32>} : memref<8x8x32xbf16, #tpu.memory_space<vmem>>, vector<1x8x32xbf16>,
    %c48 = arith.constant 48 : index
    %c0_45 = arith.constant 0 : index
    %148 = vector.load %arg10[%c48, %c0_45] : memref<64x128xf32, #tpu.memory_space<vmem>>, vector<8x128xf32>
    %149 = arith.truncf %143 : vector<8x32xf32> to vector<8x32xbf16>
    %cst_46 = arith.constant dense<0.000000e+00> : vector<8x128xf32>
    %150 = tpu.matmul %149, %7, %cst_46 {dimension_numbers = #tpu.dot_dimension_numbers<[1], [0], [0], [1], [0, 0, 1, 1], [], []>} : vector<8x32xbf16>, vector<32x128xbf16>, vector<8x128xf32> -> vector<8x128xf32>
    %151 = arith.addf %148, %150 : vector<8x128xf32>
    %152 = arith.negf %151 : vector<8x128xf32>
    %153 = math.exp %152 : vector<8x128xf32>
    %cst_47 = arith.constant 1.000000e+00 : f32
    %154 = vector.broadcast %cst_47 : f32 to vector<8x128xf32>
    %155 = arith.addf %154, %153 : vector<8x128xf32>
    %156 = arith.divf %154, %155 : vector<8x128xf32>
    %157 = math.tanh %151 : vector<8x128xf32>
    %158 = vector.extract_strided_slice %156 {offsets = [0, 0], sizes = [8, 32], strides = [1, 1]} : vector<8x128xf32> to vector<8x32xf32>
    %159 = vector.extract_strided_slice %156 {offsets = [0, 32], sizes = [8, 32], strides = [1, 1]} : vector<8x128xf32> to vector<8x32xf32>
    %160 = vector.extract_strided_slice %157 {offsets = [0, 64], sizes = [8, 32], strides = [1, 1]} : vector<8x128xf32> to vector<8x32xf32>
    %161 = vector.extract_strided_slice %156 {offsets = [0, 96], sizes = [8, 32], strides = [1, 1]} : vector<8x128xf32> to vector<8x32xf32>
    %162 = arith.mulf %159, %141 : vector<8x32xf32>
    %163 = arith.mulf %158, %160 : vector<8x32xf32>
    %164 = arith.addf %162, %163 : vector<8x32xf32>
    %165 = math.tanh %164 : vector<8x32xf32>
    %166 = arith.mulf %161, %165 : vector<8x32xf32>
    %167 = arith.truncf %166 : vector<8x32xf32> to vector<8x32xbf16>
    %c6 = arith.constant 6 : index
    %c0_48 = arith.constant 0 : index
    %c0_49 = arith.constant 0 : index
    %168 = vector.load %arg7[%c6, %c0_48, %c0_49] : memref<8x8x32xbf16, #tpu.memory_space<vmem>>, vector<1x8x32xbf16>
    %169 = vector.shape_cast %168 : vector<1x8x32xbf16> to vector<8x32xbf16>
    %170 = vector.shape_cast %167 : vector<8x32xbf16> to vector<1x8x32xbf16>
    tpu.vector_store %arg7[%c6, %c0_48, %c0_49], %170 {strides = array<i32>} : memref<8x8x32xbf16, #tpu.memory_space<vmem>>, vector<1x8x32xbf16>,
    %c56 = arith.constant 56 : index
    %c0_50 = arith.constant 0 : index
    %171 = vector.load %arg10[%c56, %c0_50] : memref<64x128xf32, #tpu.memory_space<vmem>>, vector<8x128xf32>
    %172 = arith.truncf %166 : vector<8x32xf32> to vector<8x32xbf16>
    %cst_51 = arith.constant dense<0.000000e+00> : vector<8x128xf32>
    %173 = tpu.matmul %172, %7, %cst_51 {dimension_numbers = #tpu.dot_dimension_numbers<[1], [0], [0], [1], [0, 0, 1, 1], [], []>} : vector<8x32xbf16>, vector<32x128xbf16>, vector<8x128xf32> -> vector<8x128xf32>
    %174 = arith.addf %171, %173 : vector<8x128xf32>
    %175 = arith.negf %174 : vector<8x128xf32>
    %176 = math.exp %175 : vector<8x128xf32>
    %cst_52 = arith.constant 1.000000e+00 : f32
    %177 = vector.broadcast %cst_52 : f32 to vector<8x128xf32>
    %178 = arith.addf %177, %176 : vector<8x128xf32>
    %179 = arith.divf %177, %178 : vector<8x128xf32>
    %180 = math.tanh %174 : vector<8x128xf32>
    %181 = vector.extract_strided_slice %179 {offsets = [0, 0], sizes = [8, 32], strides = [1, 1]} : vector<8x128xf32> to vector<8x32xf32>
    %182 = vector.extract_strided_slice %179 {offsets = [0, 32], sizes = [8, 32], strides = [1, 1]} : vector<8x128xf32> to vector<8x32xf32>
    %183 = vector.extract_strided_slice %180 {offsets = [0, 64], sizes = [8, 32], strides = [1, 1]} : vector<8x128xf32> to vector<8x32xf32>
    %184 = vector.extract_strided_slice %179 {offsets = [0, 96], sizes = [8, 32], strides = [1, 1]} : vector<8x128xf32> to vector<8x32xf32>
    %185 = arith.mulf %182, %164 : vector<8x32xf32>
    %186 = arith.mulf %181, %183 : vector<8x32xf32>
    %187 = arith.addf %185, %186 : vector<8x32xf32>
    %188 = math.tanh %187 : vector<8x32xf32>
    %189 = arith.mulf %184, %188 : vector<8x32xf32>
    %190 = arith.truncf %189 : vector<8x32xf32> to vector<8x32xbf16>
    %c7 = arith.constant 7 : index
    %c0_53 = arith.constant 0 : index
    %c0_54 = arith.constant 0 : index
    %191 = vector.load %arg7[%c7, %c0_53, %c0_54] : memref<8x8x32xbf16, #tpu.memory_space<vmem>>, vector<1x8x32xbf16>
    %192 = vector.shape_cast %191 : vector<1x8x32xbf16> to vector<8x32xbf16>
    %193 = vector.shape_cast %190 : vector<8x32xbf16> to vector<1x8x32xbf16>
    tpu.vector_store %arg7[%c7, %c0_53, %c0_54], %193 {strides = array<i32>} : memref<8x8x32xbf16, #tpu.memory_space<vmem>>, vector<1x8x32xbf16>,
    %c0_55 = arith.constant 0 : index
    %c0_56 = arith.constant 0 : index
    %194 = vector.load %arg8[%c0_55, %c0_56] : memref<8x32xf32, #tpu.memory_space<vmem>>, vector<8x32xf32>
    tpu.vector_store %arg8[%c0_55, %c0_56], %189 {strides = array<i32>} : memref<8x32xf32, #tpu.memory_space<vmem>>, vector<8x32xf32>,
    %c0_57 = arith.constant 0 : index
    %c0_58 = arith.constant 0 : index
    %195 = vector.load %arg9[%c0_57, %c0_58] : memref<8x32xf32, #tpu.memory_space<vmem>>, vector<8x32xf32>
    tpu.vector_store %arg9[%c0_57, %c0_58], %187 {strides = array<i32>} : memref<8x32xf32, #tpu.memory_space<vmem>>, vector<8x32xf32>,
    return
  }
  func.func @transform_0(%arg0: i32) -> (i32, i32) {
    %c0_i32 = arith.constant 0 : i32
    %c0_i32_0 = arith.constant 0 : i32
    %c0_i32_1 = arith.constant 0 : i32
    return %c0_i32, %c0_i32_0 : i32, i32
  }
  func.func @transform_1(%arg0: i32) -> (i32, i32) {
    %c0_i32 = arith.constant 0 : i32
    %c0_i32_0 = arith.constant 0 : i32
    %c0_i32_1 = arith.constant 0 : i32
    return %c0_i32, %c0_i32_0 : i32, i32
  }
  func.func @transform_2(%arg0: i32) -> (i32, i32) {
    %c0_i32 = arith.constant 0 : i32
    %c0_i32_0 = arith.constant 0 : i32
    %c0_i32_1 = arith.constant 0 : i32
    return %c0_i32, %c0_i32_0 : i32, i32
  }
  func.func @transform_3(%arg0: i32) -> (i32, i32) {
    %c0_i32 = arith.constant 0 : i32
    %c0_i32_0 = arith.constant 0 : i32
    %c0_i32_1 = arith.constant 0 : i32
    return %c0_i32, %c0_i32_0 : i32, i32
  }
  func.func @transform_4(%arg0: i32) -> (i32, i32) {
    %c0_i32 = arith.constant 0 : i32
    %c0_i32_0 = arith.constant 0 : i32
    %c0_i32_1 = arith.constant 0 : i32
    return %c0_i32, %c0_i32_0 : i32, i32
  }
  func.func @transform_5(%arg0: i32) -> (i32, i32) {
    %c0_i32 = arith.constant 0 : i32
    %c0_i32_0 = arith.constant 0 : i32
    %c0_i32_1 = arith.constant 0 : i32
    return %c0_i32, %c0_i32_0 : i32, i32
  }
  func.func @transform_6(%arg0: i32) -> (i32, i32, i32) {
    %c0_i32 = arith.constant 0 : i32
    %c0_i32_0 = arith.constant 0 : i32
    %c0_i32_1 = arith.constant 0 : i32
    %c0_i32_2 = arith.constant 0 : i32
    return %c0_i32, %c0_i32_0, %c0_i32_1 : i32, i32, i32
  }
  func.func @transform_7(%arg0: i32) -> (i32, i32) {
    %c0_i32 = arith.constant 0 : i32
    %c0_i32_0 = arith.constant 0 : i32
    %c0_i32_1 = arith.constant 0 : i32
    return %c0_i32, %c0_i32_0 : i32, i32
  }
  func.func @transform_8(%arg0: i32) -> (i32, i32) {
    %c0_i32 = arith.constant 0 : i32
    %c0_i32_0 = arith.constant 0 : i32
    %c0_i32_1 = arith.constant 0 : i32
    return %c0_i32, %c0_i32_0 : i32, i32
  }
}

</mosaic_0001>

<llo_original>
// kernel: tpu_custom_call.1
$region0: #{tpu_custom_call.1}
  #allocation0 [shape = 'u32[]', space=smem, size = 0x4, offset = 0x4, fixed_abs, tag = 'smem constant byte address 0x4 - core index']
  #allocation1 [shape = 'u32[72,128]{1,0:T(1,128)}', space=vmem, size = 0x9000, scoped, tag = 'internal scratch']
  #allocation2 [shape = 'f32[64,128]{1,0:T(8,128)}', space=vmem, size = 0x8000, scoped, tag = 'scratch operand']
  %s0 = inlined_call_operand.vmem [shape: bf16[64,32], index: 0, kind: input, shape index: {}]
  %s1 = inlined_call_operand.vmem [shape: f32[8,32], index: 1, kind: input, shape index: {}]
  %s2 = inlined_call_operand.vmem [shape: f32[8,32], index: 2, kind: input, shape index: {}]
  %s3 = inlined_call_operand.vmem [shape: bf16[32,128], index: 3, kind: input, shape index: {}]
  %s4 = inlined_call_operand.vmem [shape: bf16[32,128], index: 4, kind: input, shape index: {}]
  %s5 = inlined_call_operand.vmem [shape: f32[1,128], index: 5, kind: input, shape index: {}]
  %s6 = inlined_call_operand.hbm [shape: bf16[8,8,32], index: 6, kind: output, shape index: {0}]
  %s7 = inlined_call_operand.hbm [shape: f32[8,32], index: 7, kind: output, shape index: {1}]
  %s8 = inlined_call_operand.hbm [shape: f32[8,32], index: 8, kind: output, shape index: {2}]
  %9 = xla_tuple %s6, %s7, %s8
  %s10 = sld [smem:[#allocation0]]
  $region50: #{tpu_custom_call.1} parent=0
    _
  %s12 = ssub.s32 1, %s10
  %s13 = scalar_select 0, %s12, %s10
  $region1: #{tpu_custom_call.1} parent=0
    #allocation3 [shape = 'u8[16384]{0}', space=vmem, size = 0x4000, scoped, tag = 'output window, operand 0, single buffered']
    #allocation4 [shape = 's32[1]{0}', space=sflag, size = 0x4, scoped, tag = 'scoped memory for tpu_custom_call.1']
    #allocation5 [shape = 'u8[4096]{0}', space=vmem, size = 0x1000, scoped, tag = 'output window, operand 1, single buffered']
    #allocation6 [shape = 's32[1]{0}', space=sflag, size = 0x4, scoped, tag = 'scoped memory for tpu_custom_call.1']
    #allocation7 [shape = 'u8[4096]{0}', space=vmem, size = 0x1000, scoped, tag = 'output window, operand 2, single buffered']
    %14 = vsyncpa [#allocation4], 0
    %15 = vsyncpa [#allocation6], 0
    // Predicated region
    $region2: #{tpu_custom_call.1} parent=1 // pred_check
      _
    $region3: #{tpu_custom_call.1} parent=1 // pred_check_branch
      %17 = sbr.rel (0) target = $region5
    $region4: #{tpu_custom_call.1} parent=1 // pred_region
      _
    $region5: #{tpu_custom_call.1} parent=1 // pred_fallthru
      _
    // Predicated region
    $region6: #{tpu_custom_call.1} parent=1 // pred_check
      _
    $region7: #{tpu_custom_call.1} parent=1 // pred_check_branch
      %19 = sbr.rel (0) target = $region9
    $region8: #{tpu_custom_call.1} parent=1 // pred_region
      _
    $region9: #{tpu_custom_call.1} parent=1 // pred_fallthru
      _
    // Predicated region
    $region10: #{tpu_custom_call.1} parent=1 // pred_check
      _
    $region11: #{tpu_custom_call.1} parent=1 // pred_check_branch
      %21 = sbr.rel (0) target = $region13
    $region12: #{tpu_custom_call.1} parent=1 // pred_region
      _
    $region13: #{tpu_custom_call.1} parent=1 // pred_fallthru
      _
    // Predicated region
    $region14: #{tpu_custom_call.1} parent=1 // pred_check
      _
    $region15: #{tpu_custom_call.1} parent=1 // pred_check_branch
      %23 = sbr.rel (0) target = $region17
    $region16: #{tpu_custom_call.1} parent=1 // pred_region
      _
    $region17: #{tpu_custom_call.1} parent=1 // pred_fallthru
      _
    // Predicated region
    $region18: #{tpu_custom_call.1} parent=1 // pred_check
      _
    $region19: #{tpu_custom_call.1} parent=1 // pred_check_branch
      %25 = sbr.rel (0) target = $region21
    $region20: #{tpu_custom_call.1} parent=1 // pred_region
      _
    $region21: #{tpu_custom_call.1} parent=1 // pred_fallthru
      _
    // Predicated region
    $region22: #{tpu_custom_call.1} parent=1 // pred_check
      _
    $region23: #{tpu_custom_call.1} parent=1 // pred_check_branch
      %27 = sbr.rel (0) target = $region25
    $region24: #{tpu_custom_call.1} parent=1 // pred_region
      _
    $region25: #{tpu_custom_call.1} parent=1 // pred_fallthru
      _
    %v29 = vld [vmem:[%s0] sm:$0xf]
    %v30 = vld [vmem:[%s0 + $0x4] sm:$0xf]
    %v31 = vld [vmem:[%s0 + $0x8] sm:$0xf]
    %v32 = vld [vmem:[%s0 + $0xc] sm:$0xf]
    %v33 = vld [vmem:[%s0 + $0x10] sm:$0xf]
    %v34 = vld [vmem:[%s0 + $0x14] sm:$0xf]
    %v35 = vld [vmem:[%s0 + $0x18] sm:$0xf]
    %v36 = vld [vmem:[%s0 + $0x1c] sm:$0xf]
    %v37 = vld [vmem:[%s3] sm:$0xf]
    %v38 = vld [vmem:[%s3 + $0x4] sm:$0xf]
    %v39 = vld [vmem:[%s3 + $0x8] sm:$0xf]
    %v40 = vld [vmem:[%s3 + $0xc] sm:$0xf]
    %v41 = vld [vmem:[%s5] sm:$0x1]
    %v43 = vperm.slane %v41, 0
    %v53 = vunpack.c.l.b16 %v29
    %v54 = vunpack.c.l.b16 %v30
    %v55 = vunpack.c.l.b16 %v31
    %v56 = vunpack.c.l.b16 %v32
    %v57 = vunpack.c.l.b16 %v33
    %v58 = vunpack.c.l.b16 %v34
    %v59 = vunpack.c.l.b16 %v35
    %v60 = vunpack.c.l.b16 %v36
    %v61 = vpack.c.b16 %v54, %v53
    %v62 = vpack.c.b16 %v56, %v55
    %v63 = vpack.c.b16 %v58, %v57
    %v64 = vpack.c.b16 %v60, %v59
    %v69 = vunpack.c.l.b16 %v37
    %v70 = vunpack.c.l.b16 %v38
    %v71 = vunpack.c.l.b16 %v39
    %v72 = vunpack.c.l.b16 %v40
    %v73 = vpack.c.b16 %v70, %v69
    %v74 = vpack.c.b16 %v72, %v71
    %vm77 = vcmask 261120
    %v79 = vsel %vm77, %v61, 0
    %v82 = vsel %vm77, %v62, 0
    %v85 = vsel %vm77, %v63, 0
    %v88 = vsel %vm77, %v64, 0
    %90 = vmatpush.bf16.msra.mxu0 0
    %91 = vmatpush.bf16.msra.mxu0 0
    %92 = vmatpush.bf16.msra.mxu0 0
    %93 = vmatpush.bf16.msra.mxu0 0
    %94 = vmatpush.bf16.msra.mxu0 0
    %95 = vmatpush.bf16.msra.mxu0 0
    %96 = vmatpush.bf16.msra.mxu0 %v74
    %97 = vmatpush.bf16.msra.mxu0 %v73
    %98 = vmatmul.bf16.gmra.mxu0 %v79
    %v99 = vpop.f32.mrf.mxu0
    %v100 = vadd.f32 %v43, %v99
    %v101 = vpop.f32.mrf.mxu0
    %v102 = vadd.f32 %v43, %v101
    %103 = vmatmul.bf16.gmra.mxu0 %v82
    %v104 = vpop.f32.mrf.mxu0
    %v105 = vadd.f32 %v43, %v104
    %v106 = vpop.f32.mrf.mxu0
    %v107 = vadd.f32 %v43, %v106
    %108 = vmatmul.bf16.gmra.mxu0 %v85
    %v109 = vpop.f32.mrf.mxu0
    %v110 = vadd.f32 %v43, %v109
    %v111 = vpop.f32.mrf.mxu0
    %v112 = vadd.f32 %v43, %v111
    %113 = vmatmul.bf16.gmra.mxu0 %v88
    %v114 = vpop.f32.mrf.mxu0
    %v115 = vadd.f32 %v43, %v114
    %v116 = vpop.f32.mrf.mxu0
    %v117 = vadd.f32 %v43, %v116
    %118 = vdwg.mxu0
    %119 = vst [vmem:[#allocation2] sm:$0xff] %v100
    %120 = vst [vmem:[#allocation2 + $0x8] sm:$0xff] %v102
    %121 = vst [vmem:[#allocation2 + $0x10] sm:$0xff] %v105
    %122 = vst [vmem:[#allocation2 + $0x18] sm:$0xff] %v107
    %123 = vst [vmem:[#allocation2 + $0x20] sm:$0xff] %v110
    %124 = vst [vmem:[#allocation2 + $0x28] sm:$0xff] %v112
    %125 = vst [vmem:[#allocation2 + $0x30] sm:$0xff] %v115
    %126 = vst [vmem:[#allocation2 + $0x38] sm:$0xff] %v117
    %v127 = vld [vmem:[%s4] sm:$0xf]
    %v128 = vld [vmem:[%s4 + $0x4] sm:$0xf]
    %v129 = vld [vmem:[%s4 + $0x8] sm:$0xf]
    %v130 = vld [vmem:[%s4 + $0xc] sm:$0xf]
    %v131 = vld [vmem:[%s1] sm:$0xff]
    %v132 = vld [vmem:[%s2] sm:$0xff]
    %v133 = vld [vmem:[#allocation2] sm:$0xff]
    %v134 = vpack.c.bf16 %v131, %v131
    %v139 = vunpack.c.l.b16 %v127
    %v140 = vunpack.c.l.b16 %v128
    %v141 = vunpack.c.l.b16 %v129
    %v142 = vunpack.c.l.b16 %v130
    %v143 = vpack.c.b16 %v140, %v139
    %v144 = vpack.c.b16 %v142, %v141
    %v148 = vsel %vm77, %v134, 0
    %150 = vmatpush.bf16.msra.mxu0 0
    %151 = vmatpush.bf16.msra.mxu0 0
    %152 = vmatpush.bf16.msra.mxu0 0
    %153 = vmatpush.bf16.msra.mxu0 0
    %154 = vmatpush.bf16.msra.mxu0 0
    %155 = vmatpush.bf16.msra.mxu0 0
    %156 = vmatpush.bf16.msra.mxu0 %v144
    %157 = vmatpush.bf16.msra.mxu0 %v143
    %158 = vmatmul.bf16.gmra.mxu0 %v148
    %v159 = vpop.f32.mrf.mxu0
    %v160 = vadd.f32 0.0, %v159
    %v161 = vpop.f32.mrf.mxu0
    %162 = vdwg.mxu0
    %v163 = vadd.f32 %v133, %v160
    %v164 = vxor.u32 %v163, 2147483648
    %v165 = vmul.f32 %v164, 1.442695
    %v166 = vpow.pop %v165
    %v167 = vadd.f32 %v166, 1.0
    %v168 = vrcp.pop %v167
    %v169 = vmul.f32 %v167, %v168
    %v170 = vsub.f32 1.0, %v169
    %v171 = vmul.f32 %v168, %v170
    %v172 = vadd.f32 %v168, %v171
    %vm173 = vweird.f32 %v167
    %vm174 = vweird.f32 %v168
    %vm175 = vmor %vm173, %vm174
    %v176 = vsel %vm175, %v168, %v172
    %v177 = vand.u32 2147483647, %v167
    %vm178 = vcmp.eq.f32.partialorder %v177, 8.507059e+37
    %v179 = vand.u32 %v167, 2147483648
    %v180 = vor.u32 1.1754944e-38, %v179
    %v181 = vsel %vm178, %v180, %v176
    %v182 = vmul.f32 1.0, %v181
    %v183 = vtanh.pop %v163
    %185 = vrot.lane.b32.xlu0 %v132, 32
    %v186 = vpop.permute.xlu0 %185
    %v188 = vmul.f32 %v182, %v186
    %190 = vrot.lane.b32.xlu0 %v183, 64
    %v191 = vpop.permute.xlu0 %190
    %v193 = vmul.f32 %v182, %v191
    %195 = vrot.lane.b32.xlu0 %v193, 32
    %v196 = vpop.permute.xlu0 %195
    %v198 = vadd.f32 %v188, %v196
    %v199 = vtanh.pop %v198
    %201 = vrot.lane.b32.xlu0 %v199, 64
    %v202 = vpop.permute.xlu0 %201
    %v204 = vmul.f32 %v182, %v202
    %v205 = vpack.c.bf16 %v204, %v204
    %207 = vrot.lane.b32.xlu0 %v205, 32
    %v208 = vpop.permute.xlu0 %207
    %vm210 = vcmask 257024
    %211 = vst.msk [vmem:[#allocation3] sm:$0xf] %vm210, %v208
    %v212 = vld [vmem:[#allocation2 + $0x8] sm:$0xff]
    %v213 = vunpack.c.l.b16 %v205
    %v214 = vpack.c.b16 %v213, %v213
    %215 = vrot.lane.b32.xlu0 %v214, 32
    %v216 = vpop.permute.xlu0 %215
    %v218 = vsel %vm77, %v216, 0
    %220 = vmatpush.bf16.msra.mxu0 0
    %221 = vmatpush.bf16.msra.mxu0 0
    %222 = vmatpush.bf16.msra.mxu0 0
    %223 = vmatpush.bf16.msra.mxu0 0
    %224 = vmatpush.bf16.msra.mxu0 0
    %225 = vmatpush.bf16.msra.mxu0 0
    %226 = vmatpush.bf16.msra.mxu0 %v144
    %227 = vmatpush.bf16.msra.mxu0 %v143
    %228 = vmatmul.bf16.gmra.mxu0 %v218
    %v229 = vpop.f32.mrf.mxu0
    %v230 = vadd.f32 0.0, %v229
    %v231 = vpop.f32.mrf.mxu0
    %232 = vdwg.mxu0
    %v233 = vadd.f32 %v212, %v230
    %v234 = vxor.u32 %v233, 2147483648
    %v235 = vmul.f32 %v234, 1.442695
    %v236 = vpow.pop %v235
    %v237 = vadd.f32 %v236, 1.0
    %v238 = vrcp.pop %v237
    %v239 = vmul.f32 %v237, %v238
    %v240 = vsub.f32 1.0, %v239
    %v241 = vmul.f32 %v238, %v240
    %v242 = vadd.f32 %v238, %v241
    %vm243 = vweird.f32 %v237
    %vm244 = vweird.f32 %v238
    %vm245 = vmor %vm243, %vm244
    %v246 = vsel %vm245, %v238, %v242
    %v247 = vand.u32 2147483647, %v237
    %vm248 = vcmp.eq.f32.partialorder %v247, 8.507059e+37
    %v249 = vand.u32 %v237, 2147483648
    %v250 = vor.u32 1.1754944e-38, %v249
    %v251 = vsel %vm248, %v250, %v246
    %v252 = vmul.f32 1.0, %v251
    %v253 = vtanh.pop %v233
    %v254 = vmul.f32 %v252, %v198
    %256 = vrot.lane.b32.xlu0 %v253, 64
    %v257 = vpop.permute.xlu0 %256
    %v259 = vmul.f32 %v252, %v257
    %261 = vrot.lane.b32.xlu0 %v259, 32
    %v262 = vpop.permute.xlu0 %261
    %v264 = vadd.f32 %v254, %v262
    %v265 = vtanh.pop %v264
    %267 = vrot.lane.b32.xlu0 %v265, 64
    %v268 = vpop.permute.xlu0 %267
    %v270 = vmul.f32 %v252, %v268
    %v271 = vpack.c.bf16 %v270, %v270
    %273 = vrot.lane.b32.xlu0 %v271, 32
    %v274 = vpop.permute.xlu0 %273
    %s276 = scalar_lea.vmem [#allocation3], 4
    %277 = vst.msk [vmem:[%s276] sm:$0xf] %vm210, %v274
    %v278 = vld [vmem:[#allocation2 + $0x10] sm:$0xff]
    %v279 = vunpack.c.l.b16 %v271
    %v280 = vpack.c.b16 %v279, %v279
    %281 = vrot.lane.b32.xlu0 %v280, 32
    %v282 = vpop.permute.xlu0 %281
    %v284 = vsel %vm77, %v282, 0
    %286 = vmatpush.bf16.msra.mxu0 0
    %287 = vmatpush.bf16.msra.mxu0 0
    %288 = vmatpush.bf16.msra.mxu0 0
    %289 = vmatpush.bf16.msra.mxu0 0
    %290 = vmatpush.bf16.msra.mxu0 0
    %291 = vmatpush.bf16.msra.mxu0 0
    %292 = vmatpush.bf16.msra.mxu0 %v144
    %293 = vmatpush.bf16.msra.mxu0 %v143
    %294 = vmatmul.bf16.gmra.mxu0 %v284
    %v295 = vpop.f32.mrf.mxu0
    %v296 = vadd.f32 0.0, %v295
    %v297 = vpop.f32.mrf.mxu0
    %298 = vdwg.mxu0
    %v299 = vadd.f32 %v278, %v296
    %v300 = vxor.u32 %v299, 2147483648
    %v301 = vmul.f32 %v300, 1.442695
    %v302 = vpow.pop %v301
    %v303 = vadd.f32 %v302, 1.0
    %v304 = vrcp.pop %v303
    %v305 = vmul.f32 %v303, %v304
    %v306 = vsub.f32 1.0, %v305
    %v307 = vmul.f32 %v304, %v306
    %v308 = vadd.f32 %v304, %v307
    %vm309 = vweird.f32 %v303
    %vm310 = vweird.f32 %v304
    %vm311 = vmor %vm309, %vm310
    %v312 = vsel %vm311, %v304, %v308
    %v313 = vand.u32 2147483647, %v303
    %vm314 = vcmp.eq.f32.partialorder %v313, 8.507059e+37
    %v315 = vand.u32 %v303, 2147483648
    %v316 = vor.u32 1.1754944e-38, %v315
    %v317 = vsel %vm314, %v316, %v312
    %v318 = vmul.f32 1.0, %v317
    %v319 = vtanh.pop %v299
    %v320 = vmul.f32 %v318, %v264
    %322 = vrot.lane.b32.xlu0 %v319, 64
    %v323 = vpop.permute.xlu0 %322
    %v325 = vmul.f32 %v318, %v323
    %327 = vrot.lane.b32.xlu0 %v325, 32
    %v328 = vpop.permute.xlu0 %327
    %v330 = vadd.f32 %v320, %v328
    %v331 = vtanh.pop %v330
    %333 = vrot.lane.b32.xlu0 %v331, 64
    %v334 = vpop.permute.xlu0 %333
    %v336 = vmul.f32 %v318, %v334
    %v337 = vpack.c.bf16 %v336, %v336
    %339 = vrot.lane.b32.xlu0 %v337, 32
    %v340 = vpop.permute.xlu0 %339
    %s342 = scalar_lea.vmem [#allocation3], 8
    %343 = vst.msk [vmem:[%s342] sm:$0xf] %vm210, %v340
    %v344 = vld [vmem:[#allocation2 + $0x18] sm:$0xff]
    %v345 = vunpack.c.l.b16 %v337
    %v346 = vpack.c.b16 %v345, %v345
    %347 = vrot.lane.b32.xlu0 %v346, 32
    %v348 = vpop.permute.xlu0 %347
    %v350 = vsel %vm77, %v348, 0
    %352 = vmatpush.bf16.msra.mxu0 0
    %353 = vmatpush.bf16.msra.mxu0 0
    %354 = vmatpush.bf16.msra.mxu0 0
    %355 = vmatpush.bf16.msra.mxu0 0
    %356 = vmatpush.bf16.msra.mxu0 0
    %357 = vmatpush.bf16.msra.mxu0 0
    %358 = vmatpush.bf16.msra.mxu0 %v144
    %359 = vmatpush.bf16.msra.mxu0 %v143
    %360 = vmatmul.bf16.gmra.mxu0 %v350
    %v361 = vpop.f32.mrf.mxu0
    %v362 = vadd.f32 0.0, %v361
    %v363 = vpop.f32.mrf.mxu0
    %364 = vdwg.mxu0
    %v365 = vadd.f32 %v344, %v362
    %v366 = vxor.u32 %v365, 2147483648
    %v367 = vmul.f32 %v366, 1.442695
    %v368 = vpow.pop %v367
    %v369 = vadd.f32 %v368, 1.0
    %v370 = vrcp.pop %v369
    %v371 = vmul.f32 %v369, %v370
    %v372 = vsub.f32 1.0, %v371
    %v373 = vmul.f32 %v370, %v372
    %v374 = vadd.f32 %v370, %v373
    %vm375 = vweird.f32 %v369
    %vm376 = vweird.f32 %v370
    %vm377 = vmor %vm375, %vm376
    %v378 = vsel %vm377, %v370, %v374
    %v379 = vand.u32 2147483647, %v369
    %vm380 = vcmp.eq.f32.partialorder %v379, 8.507059e+37
    %v381 = vand.u32 %v369, 2147483648
    %v382 = vor.u32 1.1754944e-38, %v381
    %v383 = vsel %vm380, %v382, %v378
    %v384 = vmul.f32 1.0, %v383
    %v385 = vtanh.pop %v365
    %v386 = vmul.f32 %v384, %v330
    %388 = vrot.lane.b32.xlu0 %v385, 64
    %v389 = vpop.permute.xlu0 %388
    %v391 = vmul.f32 %v384, %v389
    %393 = vrot.lane.b32.xlu0 %v391, 32
    %v394 = vpop.permute.xlu0 %393
    %v396 = vadd.f32 %v386, %v394
    %v397 = vtanh.pop %v396
    %399 = vrot.lane.b32.xlu0 %v397, 64
    %v400 = vpop.permute.xlu0 %399
    %v402 = vmul.f32 %v384, %v400
    %v403 = vpack.c.bf16 %v402, %v402
    %405 = vrot.lane.b32.xlu0 %v403, 32
    %v406 = vpop.permute.xlu0 %405
    %s408 = scalar_lea.vmem [#allocation3], 12
    %409 = vst.msk [vmem:[%s408] sm:$0xf] %vm210, %v406
    %v410 = vld [vmem:[#allocation2 + $0x20] sm:$0xff]
    %v411 = vunpack.c.l.b16 %v403
    %v412 = vpack.c.b16 %v411, %v411
    %413 = vrot.lane.b32.xlu0 %v412, 32
    %v414 = vpop.permute.xlu0 %413
    %v416 = vsel %vm77, %v414, 0
    %418 = vmatpush.bf16.msra.mxu0 0
    %419 = vmatpush.bf16.msra.mxu0 0
    %420 = vmatpush.bf16.msra.mxu0 0
    %421 = vmatpush.bf16.msra.mxu0 0
    %422 = vmatpush.bf16.msra.mxu0 0
    %423 = vmatpush.bf16.msra.mxu0 0
    %424 = vmatpush.bf16.msra.mxu0 %v144
    %425 = vmatpush.bf16.msra.mxu0 %v143
    %426 = vmatmul.bf16.gmra.mxu0 %v416
    %v427 = vpop.f32.mrf.mxu0
    %v428 = vadd.f32 0.0, %v427
    %v429 = vpop.f32.mrf.mxu0
    %430 = vdwg.mxu0
    %v431 = vadd.f32 %v410, %v428
    %v432 = vxor.u32 %v431, 2147483648
    %v433 = vmul.f32 %v432, 1.442695
    %v434 = vpow.pop %v433
    %v435 = vadd.f32 %v434, 1.0
    %v436 = vrcp.pop %v435
    %v437 = vmul.f32 %v435, %v436
    %v438 = vsub.f32 1.0, %v437
    %v439 = vmul.f32 %v436, %v438
    %v440 = vadd.f32 %v436, %v439
    %vm441 = vweird.f32 %v435
    %vm442 = vweird.f32 %v436
    %vm443 = vmor %vm441, %vm442
    %v444 = vsel %vm443, %v436, %v440
    %v445 = vand.u32 2147483647, %v435
    %vm446 = vcmp.eq.f32.partialorder %v445, 8.507059e+37
    %v447 = vand.u32 %v435, 2147483648
    %v448 = vor.u32 1.1754944e-38, %v447
    %v449 = vsel %vm446, %v448, %v444
    %v450 = vmul.f32 1.0, %v449
    %v451 = vtanh.pop %v431
    %v452 = vmul.f32 %v450, %v396
    %454 = vrot.lane.b32.xlu0 %v451, 64
    %v455 = vpop.permute.xlu0 %454
    %v457 = vmul.f32 %v450, %v455
    %459 = vrot.lane.b32.xlu0 %v457, 32
    %v460 = vpop.permute.xlu0 %459
    %v462 = vadd.f32 %v452, %v460
    %v463 = vtanh.pop %v462
    %465 = vrot.lane.b32.xlu0 %v463, 64
    %v466 = vpop.permute.xlu0 %465
    %v468 = vmul.f32 %v450, %v466
    %v469 = vpack.c.bf16 %v468, %v468
    %471 = vrot.lane.b32.xlu0 %v469, 32
    %v472 = vpop.permute.xlu0 %471
    %s474 = scalar_lea.vmem [#allocation3], 16
    %475 = vst.msk [vmem:[%s474] sm:$0xf] %vm210, %v472
    %v476 = vld [vmem:[#allocation2 + $0x28] sm:$0xff]
    %v477 = vunpack.c.l.b16 %v469
    %v478 = vpack.c.b16 %v477, %v477
    %479 = vrot.lane.b32.xlu0 %v478, 32
    %v480 = vpop.permute.xlu0 %479
    %v482 = vsel %vm77, %v480, 0
    %484 = vmatpush.bf16.msra.mxu0 0
    %485 = vmatpush.bf16.msra.mxu0 0
    %486 = vmatpush.bf16.msra.mxu0 0
    %487 = vmatpush.bf16.msra.mxu0 0
    %488 = vmatpush.bf16.msra.mxu0 0
    %489 = vmatpush.bf16.msra.mxu0 0
    %490 = vmatpush.bf16.msra.mxu0 %v144
    %491 = vmatpush.bf16.msra.mxu0 %v143
    %492 = vmatmul.bf16.gmra.mxu0 %v482
    %v493 = vpop.f32.mrf.mxu0
    %v494 = vadd.f32 0.0, %v493
    %v495 = vpop.f32.mrf.mxu0
    %496 = vdwg.mxu0
    %v497 = vadd.f32 %v476, %v494
    %v498 = vxor.u32 %v497, 2147483648
    %v499 = vmul.f32 %v498, 1.442695
    %v500 = vpow.pop %v499
    %v501 = vadd.f32 %v500, 1.0
    %v502 = vrcp.pop %v501
    %v503 = vmul.f32 %v501, %v502
    %v504 = vsub.f32 1.0, %v503
    %v505 = vmul.f32 %v502, %v504
    %v506 = vadd.f32 %v502, %v505
    %vm507 = vweird.f32 %v501
    %vm508 = vweird.f32 %v502
    %vm509 = vmor %vm507, %vm508
    %v510 = vsel %vm509, %v502, %v506
    %v511 = vand.u32 2147483647, %v501
    %vm512 = vcmp.eq.f32.partialorder %v511, 8.507059e+37
    %v513 = vand.u32 %v501, 2147483648
    %v514 = vor.u32 1.1754944e-38, %v513
    %v515 = vsel %vm512, %v514, %v510
    %v516 = vmul.f32 1.0, %v515
    %v517 = vtanh.pop %v497
    %v518 = vmul.f32 %v516, %v462
    %520 = vrot.lane.b32.xlu0 %v517, 64
    %v521 = vpop.permute.xlu0 %520
    %v523 = vmul.f32 %v516, %v521
    %525 = vrot.lane.b32.xlu0 %v523, 32
    %v526 = vpop.permute.xlu0 %525
    %v528 = vadd.f32 %v518, %v526
    %v529 = vtanh.pop %v528
    %531 = vrot.lane.b32.xlu0 %v529, 64
    %v532 = vpop.permute.xlu0 %531
    %v534 = vmul.f32 %v516, %v532
    %v535 = vpack.c.bf16 %v534, %v534
    %537 = vrot.lane.b32.xlu0 %v535, 32
    %v538 = vpop.permute.xlu0 %537
    %s540 = scalar_lea.vmem [#allocation3], 20
    %541 = vst.msk [vmem:[%s540] sm:$0xf] %vm210, %v538
    %v542 = vld [vmem:[#allocation2 + $0x30] sm:$0xff]
    %v543 = vunpack.c.l.b16 %v535
    %v544 = vpack.c.b16 %v543, %v543
    %545 = vrot.lane.b32.xlu0 %v544, 32
    %v546 = vpop.permute.xlu0 %545
    %v548 = vsel %vm77, %v546, 0
    %550 = vmatpush.bf16.msra.mxu0 0
    %551 = vmatpush.bf16.msra.mxu0 0
    %552 = vmatpush.bf16.msra.mxu0 0
    %553 = vmatpush.bf16.msra.mxu0 0
    %554 = vmatpush.bf16.msra.mxu0 0
    %555 = vmatpush.bf16.msra.mxu0 0
    %556 = vmatpush.bf16.msra.mxu0 %v144
    %557 = vmatpush.bf16.msra.mxu0 %v143
    %558 = vmatmul.bf16.gmra.mxu0 %v548
    %v559 = vpop.f32.mrf.mxu0
    %v560 = vadd.f32 0.0, %v559
    %v561 = vpop.f32.mrf.mxu0
    %562 = vdwg.mxu0
    %v563 = vadd.f32 %v542, %v560
    %v564 = vxor.u32 %v563, 2147483648
    %v565 = vmul.f32 %v564, 1.442695
    %v566 = vpow.pop %v565
    %v567 = vadd.f32 %v566, 1.0
    %v568 = vrcp.pop %v567
    %v569 = vmul.f32 %v567, %v568
    %v570 = vsub.f32 1.0, %v569
    %v571 = vmul.f32 %v568, %v570
    %v572 = vadd.f32 %v568, %v571
    %vm573 = vweird.f32 %v567
    %vm574 = vweird.f32 %v568
    %vm575 = vmor %vm573, %vm574
    %v576 = vsel %vm575, %v568, %v572
    %v577 = vand.u32 2147483647, %v567
    %vm578 = vcmp.eq.f32.partialorder %v577, 8.507059e+37
    %v579 = vand.u32 %v567, 2147483648
    %v580 = vor.u32 1.1754944e-38, %v579
    %v581 = vsel %vm578, %v580, %v576
    %v582 = vmul.f32 1.0, %v581
    %v583 = vtanh.pop %v563
    %v584 = vmul.f32 %v582, %v528
    %586 = vrot.lane.b32.xlu0 %v583, 64
    %v587 = vpop.permute.xlu0 %586
    %v589 = vmul.f32 %v582, %v587
    %591 = vrot.lane.b32.xlu0 %v589, 32
    %v592 = vpop.permute.xlu0 %591
    %v594 = vadd.f32 %v584, %v592
    %v595 = vtanh.pop %v594
    %597 = vrot.lane.b32.xlu0 %v595, 64
    %v598 = vpop.permute.xlu0 %597
    %v600 = vmul.f32 %v582, %v598
    %v601 = vpack.c.bf16 %v600, %v600
    %603 = vrot.lane.b32.xlu0 %v601, 32
    %v604 = vpop.permute.xlu0 %603
    %s606 = scalar_lea.vmem [#allocation3], 24
    %607 = vst.msk [vmem:[%s606] sm:$0xf] %vm210, %v604
    %v608 = vld [vmem:[#allocation2 + $0x38] sm:$0xff]
    %v609 = vunpack.c.l.b16 %v601
    %v610 = vpack.c.b16 %v609, %v609
    %611 = vrot.lane.b32.xlu0 %v610, 32
    %v612 = vpop.permute.xlu0 %611
    %v614 = vsel %vm77, %v612, 0
    %616 = vmatpush.bf16.msra.mxu0 0
    %617 = vmatpush.bf16.msra.mxu0 0
    %618 = vmatpush.bf16.msra.mxu0 0
    %619 = vmatpush.bf16.msra.mxu0 0
    %620 = vmatpush.bf16.msra.mxu0 0
    %621 = vmatpush.bf16.msra.mxu0 0
    %622 = vmatpush.bf16.msra.mxu0 %v144
    %623 = vmatpush.bf16.msra.mxu0 %v143
    %624 = vmatmul.bf16.gmra.mxu0 %v614
    %v625 = vpop.f32.mrf.mxu0
    %v626 = vadd.f32 0.0, %v625
    %v627 = vpop.f32.mrf.mxu0
    %628 = vdwg.mxu0
    %v629 = vadd.f32 %v608, %v626
    %v630 = vxor.u32 %v629, 2147483648
    %v631 = vmul.f32 %v630, 1.442695
    %v632 = vpow.pop %v631
    %v633 = vadd.f32 %v632, 1.0
    %v634 = vrcp.pop %v633
    %v635 = vmul.f32 %v633, %v634
    %v636 = vsub.f32 1.0, %v635
    %v637 = vmul.f32 %v634, %v636
    %v638 = vadd.f32 %v634, %v637
    %vm639 = vweird.f32 %v633
    %vm640 = vweird.f32 %v634
    %vm641 = vmor %vm639, %vm640
    %v642 = vsel %vm641, %v634, %v638
    %v643 = vand.u32 2147483647, %v633
    %vm644 = vcmp.eq.f32.partialorder %v643, 8.507059e+37
    %v645 = vand.u32 %v633, 2147483648
    %v646 = vor.u32 1.1754944e-38, %v645
    %v647 = vsel %vm644, %v646, %v642
    %v648 = vmul.f32 1.0, %v647
    %v649 = vtanh.pop %v629
    %v650 = vmul.f32 %v648, %v594
    %652 = vrot.lane.b32.xlu0 %v649, 64
    %v653 = vpop.permute.xlu0 %652
    %v655 = vmul.f32 %v648, %v653
    %657 = vrot.lane.b32.xlu0 %v655, 32
    %v658 = vpop.permute.xlu0 %657
    %v660 = vadd.f32 %v650, %v658
    %v661 = vtanh.pop %v660
    %663 = vrot.lane.b32.xlu0 %v661, 64
    %v664 = vpop.permute.xlu0 %663
    %v666 = vmul.f32 %v648, %v664
    %v667 = vpack.c.bf16 %v666, %v666
    %669 = vrot.lane.b32.xlu0 %v667, 32
    %v670 = vpop.permute.xlu0 %669
    %s672 = scalar_lea.vmem [#allocation3], 28
    %673 = vst.msk [vmem:[%s672] sm:$0xf] %vm210, %v670
    %675 = vrot.lane.b32.xlu0 %v666, 32
    %v676 = vpop.permute.xlu0 %675
    %678 = vst.msk [vmem:[#allocation5] sm:$0xff] %vm77, %v676
    %680 = vrot.lane.b32.xlu0 %v660, 96
    %v681 = vpop.permute.xlu0 %680
    %683 = vst.msk [vmem:[#allocation7] sm:$0xff] %vm77, %v681
    // Predicated region
    $region26: #{tpu_custom_call.1} parent=1 // pred_check
      _
    $region27: #{tpu_custom_call.1} parent=1 // pred_check_branch
      %685 = sbr.rel (0) target = $region29
    $region28: #{tpu_custom_call.1} parent=1 // pred_region
      %687 = vsyncadd [#allocation4], 0
      %s688 = sshll.u32 [#allocation3], 4
      %s689 = int_to_ptr.vmem [resolvable:$true] %s688
      %s690 = sshll.u32 %s6, 4
      %s691 = int_to_ptr.hbm [resolvable:$true] %s690
      %696 = dma.vmem_to_hbm [thread:$0]  %s689, 512, %s691, [#allocation4], 64, 64, 4
    $region29: #{tpu_custom_call.1} parent=1 // pred_fallthru
      _
    // Predicated region
    $region30: #{tpu_custom_call.1} parent=1 // pred_check
      _
    $region31: #{tpu_custom_call.1} parent=1 // pred_check_branch
      %698 = sbr.rel (0) target = $region33
    $region32: #{tpu_custom_call.1} parent=1 // pred_region
      %700 = vsyncadd [#allocation6], 0
      %s702 = sshll.u32 [#allocation5], 4
      %s703 = int_to_ptr.vmem [resolvable:$true] %s702
      %s704 = sshll.u32 %s7, 4
      %s705 = int_to_ptr.hbm [resolvable:$true] %s704
      %707 = dma.vmem_to_hbm [thread:$0]  %s703, 128, %s705, [#allocation6]
    $region33: #{tpu_custom_call.1} parent=1 // pred_fallthru
      _
    // Predicated region
    $region34: #{tpu_custom_call.1} parent=1 // pred_check
      _
    $region35: #{tpu_custom_call.1} parent=1 // pred_check_branch
      %709 = sbr.rel (0) target = $region37
    $region36: #{tpu_custom_call.1} parent=1 // pred_region
      %711 = vsyncadd [#allocation6], 0
      %s713 = sshll.u32 [#allocation7], 4
      %s714 = int_to_ptr.vmem [resolvable:$true] %s713
      %s715 = sshll.u32 %s8, 4
      %s716 = int_to_ptr.hbm [resolvable:$true] %s715
      %718 = dma.vmem_to_hbm [thread:$0]  %s714, 128, %s716, [#allocation6]
    $region37: #{tpu_custom_call.1} parent=1 // pred_fallthru
      _
    // Predicated region
    $region38: #{tpu_custom_call.1} parent=1 // pred_check
      _
    $region39: #{tpu_custom_call.1} parent=1 // pred_check_branch
      %720 = sbr.rel (0) target = $region41
    $region40: #{tpu_custom_call.1} parent=1 // pred_region
      %722 = dma.done [#allocation4], 512
    $region41: #{tpu_custom_call.1} parent=1 // pred_fallthru
      _
    // Predicated region
    $region42: #{tpu_custom_call.1} parent=1 // pred_check
      _
    $region43: #{tpu_custom_call.1} parent=1 // pred_check_branch
      %724 = sbr.rel (0) target = $region45
    $region44: #{tpu_custom_call.1} parent=1 // pred_region
      %726 = dma.done [#allocation6], 128
    $region45: #{tpu_custom_call.1} parent=1 // pred_fallthru
      _
    // Predicated region
    $region46: #{tpu_custom_call.1} parent=1 // pred_check
      _
    $region47: #{tpu_custom_call.1} parent=1 // pred_check_branch
      %728 = sbr.rel (0) target = $region49
    $region48: #{tpu_custom_call.1} parent=1 // pred_region
      %730 = dma.done [#allocation6], 128
    $region49: #{tpu_custom_call.1} parent=1 // pred_fallthru
      _
    %731 = vsyncpa [#allocation4], 1
    %732 = vsyncpa [#allocation6], 1

</llo_original>
